<compile_context>
chip_gen: v7x
topology: tpu7x:2x2x1
jax: 0.10.0
libtpu: 0.0.40
codegen_flags: <defaults>
</compile_context>

<pallas_src>
import jax
import jax.numpy as jnp
from jax.experimental import pallas as pl
from jax.experimental.pallas import tpu as pltpu

LANE = 128             # TPU lane width
SUBLANE = 8            # TPU sublane width
MAX_BATCH_TILE = 512   # safe for v5e 16 MiB scoped-VMEM default / v7x 64 MiB VMEM


def _round_up(x, m):
    return (x + m - 1) // m * m


def symbolic_q_kernel(xu_ref, w1_ref, b1_ref, w2_ref, b2_ref, w3_ref,
                      w4_ref, b4_ref, w5_ref, b5_ref, w6_ref, bq_ref,
                      out_ref):
    """One batch tile: both Q heads, fused."""
    xu = xu_ref[...]                                               # (TB, D)

    # ----- head 1 -----
    h = jnp.dot(xu, w1_ref[...], preferred_element_type=jnp.float32)
    h = jnp.maximum(h + b1_ref[...], 0.0)                          # (TB, Hp)
    h = jnp.dot(h, w2_ref[...], preferred_element_type=jnp.float32)
    h = jnp.maximum(h + b2_ref[...], 0.0)
    # Final H->1 projection as VPU mul + lane reduction (avoids a degenerate
    # N=1 MXU matmul and its masked-store output path).
    q1 = jnp.sum(h * w3_ref[...], axis=-1, keepdims=True)          # (TB, 1)

    # ----- head 2 -----
    h = jnp.dot(xu, w4_ref[...], preferred_element_type=jnp.float32)
    h = jnp.maximum(h + b4_ref[...], 0.0)
    h = jnp.dot(h, w5_ref[...], preferred_element_type=jnp.float32)
    h = jnp.maximum(h + b5_ref[...], 0.0)
    q2 = jnp.sum(h * w6_ref[...], axis=-1, keepdims=True)          # (TB, 1)

    # Lane-dense output slab: q1 in lane 0, q2 in lane 1, zeros elsewhere.
    lane = jax.lax.broadcasted_iota(jnp.int32, out_ref.shape, 1)
    out = jnp.where(lane == 0, q1, jnp.where(lane == 1, q2, 0.0))
    out_ref[...] = (out + bq_ref[...]).astype(out_ref.dtype)


def symbolic_q_forward(state, action, params):
    """state: (B, num_inputs), action: (B, num_actions). Returns (q1, q2), each (B, 1)."""
    B = state.shape[0]
    H = params["w2"].shape[0]
    Hp = _round_up(H, LANE)

    # Concat + batch padding in the wrapper (layout plumbing, not compute).
    xu = jnp.concatenate([state.astype(jnp.float32),
                          action.astype(jnp.float32)], axis=1)
    D = xu.shape[1]

    B8 = _round_up(B, SUBLANE)
    TB = min(MAX_BATCH_TILE, B8)
    Bp = _round_up(B8, TB)
    if Bp != B:
        xu = jnp.pad(xu, ((0, Bp - B), (0, 0)))

    def pad2(a, rows, cols):
        return jnp.pad(a, ((0, rows - a.shape[0]), (0, cols - a.shape[1])))

    # Lane-pad hidden dims of the (small, resident) weights to full vreg width.
    w1 = pad2(params["w1"], D, Hp)
    b1 = pad2(params["b1"].reshape(1, -1), 1, Hp)
    w2 = pad2(params["w2"], Hp, Hp)
    b2 = pad2(params["b2"].reshape(1, -1), 1, Hp)
    w3 = pad2(params["w3"].reshape(1, -1), 1, Hp)    # H->1 weight as a row vector
    w4 = pad2(params["w4"], D, Hp)
    b4 = pad2(params["b4"].reshape(1, -1), 1, Hp)
    w5 = pad2(params["w5"], Hp, Hp)
    b5 = pad2(params["b5"].reshape(1, -1), 1, Hp)
    w6 = pad2(params["w6"].reshape(1, -1), 1, Hp)

    # Final-layer biases packed into lanes 0/1 of a lane-dense (1, 128) slab.
    bq = jnp.zeros((1, LANE), jnp.float32)
    bq = bq.at[0, 0].set(params["b3"].reshape(()))
    bq = bq.at[0, 1].set(params["b6"].reshape(()))

    resident = lambda a: pl.BlockSpec(a.shape, lambda i: (0, 0))

    out = pl.pallas_call(
        symbolic_q_kernel,
        out_shape=jax.ShapeDtypeStruct((Bp, LANE), jnp.float32),
        grid=(Bp // TB,),
        in_specs=[
            pl.BlockSpec((TB, D), lambda i: (i, 0)),   # xu: streamed over batch
            resident(w1), resident(b1), resident(w2), resident(b2),
            resident(w3),
            resident(w4), resident(b4), resident(w5), resident(b5),
            resident(w6), resident(bq),
        ],
        out_specs=pl.BlockSpec((TB, LANE), lambda i: (i, 0)),
        compiler_params=pltpu.CompilerParams(
            dimension_semantics=("parallel",)),
    )(xu, w1, b1, w2, b2, w3, w4, b4, w5, b5, w6, bq)

    q1 = out[:B, 0:1]
    q2 = out[:B, 1:2]
    return q1, q2


def xavier_uniform(key, fan_in, fan_out):
    a = jnp.sqrt(6.0 / (fan_in + fan_out))
    return jax.random.uniform(key, (fan_in, fan_out), jnp.float32, -a, a)


def init_symbolic_q(key, num_inputs, num_actions, hidden_dim):
    d = num_inputs + num_actions
    ks = jax.random.split(key, 6)
    return {
        # Weights stored as (in, out); PyTorch stores (out, in) and computes
        # x @ W^T, so semantics match. Biases init to 0 (constant_).
        "w1": xavier_uniform(ks[0], d, hidden_dim),
        "b1": jnp.zeros((hidden_dim,), jnp.float32),
        "w2": xavier_uniform(ks[1], hidden_dim, hidden_dim),
        "b2": jnp.zeros((hidden_dim,), jnp.float32),
        "w3": xavier_uniform(ks[2], hidden_dim, 1),
        "b3": jnp.zeros((1,), jnp.float32),
        "w4": xavier_uniform(ks[3], d, hidden_dim),
        "b4": jnp.zeros((hidden_dim,), jnp.float32),
        "w5": xavier_uniform(ks[4], hidden_dim, hidden_dim),
        "b5": jnp.zeros((hidden_dim,), jnp.float32),
        "w6": xavier_uniform(ks[5], hidden_dim, 1),
        "b6": jnp.zeros((1,), jnp.float32),
    }


def symbolic_q_ref(state, action, params):
    xu = jnp.concatenate([state, action], axis=1)
    h1 = jnp.maximum(xu @ params["w1"] + params["b1"], 0.0)
    h1 = jnp.maximum(h1 @ params["w2"] + params["b2"], 0.0)
    q1 = h1 @ params["w3"] + params["b3"]
    h2 = jnp.maximum(xu @ params["w4"] + params["b4"], 0.0)
    h2 = jnp.maximum(h2 @ params["w5"] + params["b5"], 0.0)
    q2 = h2 @ params["w6"] + params["b6"]
    return q1, q2


if __name__ == "__main__":
    key = jax.random.PRNGKey(0)
    kp, ks, ka, kb = jax.random.split(key, 4)

    batch, num_inputs, num_actions, hidden_dim = 8, 16, 8, 32

    params = init_symbolic_q(kp, num_inputs, num_actions, hidden_dim)
    # Perturb biases away from the zero init so the bias path is exercised.
    for i, name in enumerate(("b1", "b2", "b3", "b4", "b5", "b6")):
        kb, sub = jax.random.split(kb)
        params[name] = 0.1 * jax.random.normal(sub, params[name].shape, jnp.float32)

    state = jax.random.normal(ks, (batch, num_inputs), jnp.float32)
    action = jax.random.normal(ka, (batch, num_actions), jnp.float32)

    q1, q2 = symbolic_q_forward(state, action, params)
    (q1, q2) = jax.block_until_ready((q1, q2))

    r1, r2 = symbolic_q_ref(state, action, params)
    assert q1.shape == (batch, 1) and q2.shape == (batch, 1), (q1.shape, q2.shape)
    assert jnp.allclose(q1, r1, atol=1e-4, rtol=1e-4), (
        f"q1 max abs err {jnp.max(jnp.abs(q1 - r1))}")
    assert jnp.allclose(q2, r2, atol=1e-4, rtol=1e-4), (
        f"q2 max abs err {jnp.max(jnp.abs(q2 - r2))}")

    print("KERNEL_OK")
</pallas_src>

<mosaic_0001>
module attributes {stable_mosaic.version = 11 : i64} {
  func.func @symbolic_q_kernel(%arg0: i32, %arg1: memref<8x24xf32, #tpu.memory_space<vmem>>, %arg2: memref<24x128xf32, #tpu.memory_space<vmem>>, %arg3: memref<1x128xf32, #tpu.memory_space<vmem>>, %arg4: memref<128x128xf32, #tpu.memory_space<vmem>>, %arg5: memref<1x128xf32, #tpu.memory_space<vmem>>, %arg6: memref<1x128xf32, #tpu.memory_space<vmem>>, %arg7: memref<24x128xf32, #tpu.memory_space<vmem>>, %arg8: memref<1x128xf32, #tpu.memory_space<vmem>>, %arg9: memref<128x128xf32, #tpu.memory_space<vmem>>, %arg10: memref<1x128xf32, #tpu.memory_space<vmem>>, %arg11: memref<1x128xf32, #tpu.memory_space<vmem>>, %arg12: memref<1x128xf32, #tpu.memory_space<vmem>>, %arg13: memref<8x128xf32, #tpu.memory_space<vmem>>) attributes {dimension_semantics = [#tpu.dimension_semantics<parallel>], iteration_bounds = array<i64: 1>, scalar_prefetch = 0 : i64, scratch_operands = 0 : i64, tpu.core_type = #tpu.core_type<tc>, window_params = [{transform_indices = @transform_0, window_bounds = array<i64: 8, 24>}, {pipeline_mode = #tpu.pipeline_mode<synchronous>, transform_indices = @transform_1, window_bounds = array<i64: 24, 128>}, {pipeline_mode = #tpu.pipeline_mode<synchronous>, transform_indices = @transform_2, window_bounds = array<i64: 1, 128>}, {pipeline_mode = #tpu.pipeline_mode<synchronous>, transform_indices = @transform_3, window_bounds = array<i64: 128, 128>}, {pipeline_mode = #tpu.pipeline_mode<synchronous>, transform_indices = @transform_4, window_bounds = array<i64: 1, 128>}, {pipeline_mode = #tpu.pipeline_mode<synchronous>, transform_indices = @transform_5, window_bounds = array<i64: 1, 128>}, {pipeline_mode = #tpu.pipeline_mode<synchronous>, transform_indices = @transform_6, window_bounds = array<i64: 24, 128>}, {pipeline_mode = #tpu.pipeline_mode<synchronous>, transform_indices = @transform_7, window_bounds = array<i64: 1, 128>}, {pipeline_mode = #tpu.pipeline_mode<synchronous>, transform_indices = @transform_8, window_bounds = array<i64: 128, 128>}, {pipeline_mode = #tpu.pipeline_mode<synchronous>, transform_indices = @transform_9, window_bounds = array<i64: 1, 128>}, {pipeline_mode = #tpu.pipeline_mode<synchronous>, transform_indices = @transform_10, window_bounds = array<i64: 1, 128>}, {pipeline_mode = #tpu.pipeline_mode<synchronous>, transform_indices = @transform_11, window_bounds = array<i64: 1, 128>}, {transform_indices = @transform_12, window_bounds = array<i64: 8, 128>}]} {
    %c0 = arith.constant 0 : index
    %c0_0 = arith.constant 0 : index
    %0 = vector.load %arg1[%c0, %c0_0] : memref<8x24xf32, #tpu.memory_space<vmem>>, vector<8x24xf32>
    %c0_1 = arith.constant 0 : index
    %c0_2 = arith.constant 0 : index
    %1 = vector.load %arg2[%c0_1, %c0_2] : memref<24x128xf32, #tpu.memory_space<vmem>>, vector<24x128xf32>
    %cst = arith.constant dense<0.000000e+00> : vector<8x128xf32>
    %2 = tpu.matmul %0, %1, %cst {dimension_numbers = #tpu.dot_dimension_numbers<[1], [0], [0], [1], [0, 0, 1, 1], [], []>} : vector<8x24xf32>, vector<24x128xf32>, vector<8x128xf32> -> vector<8x128xf32>
    %c0_3 = arith.constant 0 : index
    %c0_4 = arith.constant 0 : index
    %3 = vector.load %arg3[%c0_3, %c0_4] : memref<1x128xf32, #tpu.memory_space<vmem>>, vector<1x128xf32>
    %4 = vector.broadcast %3 : vector<1x128xf32> to vector<8x128xf32>
    %5 = arith.addf %2, %4 : vector<8x128xf32>
    %cst_5 = arith.constant 0.000000e+00 : f32
    %6 = vector.broadcast %cst_5 : f32 to vector<8x128xf32>
    %7 = arith.maximumf %5, %6 : vector<8x128xf32>
    %c0_6 = arith.constant 0 : index
    %c0_7 = arith.constant 0 : index
    %8 = vector.load %arg4[%c0_6, %c0_7] : memref<128x128xf32, #tpu.memory_space<vmem>>, vector<128x128xf32>
    %cst_8 = arith.constant dense<0.000000e+00> : vector<8x128xf32>
    %9 = tpu.matmul %7, %8, %cst_8 {dimension_numbers = #tpu.dot_dimension_numbers<[1], [0], [0], [1], [0, 0, 1, 1], [], []>} : vector<8x128xf32>, vector<128x128xf32>, vector<8x128xf32> -> vector<8x128xf32>
    %c0_9 = arith.constant 0 : index
    %c0_10 = arith.constant 0 : index
    %10 = vector.load %arg5[%c0_9, %c0_10] : memref<1x128xf32, #tpu.memory_space<vmem>>, vector<1x128xf32>
    %11 = vector.broadcast %10 : vector<1x128xf32> to vector<8x128xf32>
    %12 = arith.addf %9, %11 : vector<8x128xf32>
    %cst_11 = arith.constant 0.000000e+00 : f32
    %13 = vector.broadcast %cst_11 : f32 to vector<8x128xf32>
    %14 = arith.maximumf %12, %13 : vector<8x128xf32>
    %c0_12 = arith.constant 0 : index
    %c0_13 = arith.constant 0 : index
    %15 = vector.load %arg6[%c0_12, %c0_13] : memref<1x128xf32, #tpu.memory_space<vmem>>, vector<1x128xf32>
    %16 = vector.broadcast %15 : vector<1x128xf32> to vector<8x128xf32>
    %17 = arith.mulf %14, %16 : vector<8x128xf32>
    %cst_14 = arith.constant dense<0.000000e+00> : vector<8xf32>
    %18 = vector.multi_reduction <add>, %17, %cst_14 [1] : vector<8x128xf32> to vector<8xf32>
    %19 = vector.shape_cast %18 : vector<8xf32> to vector<8x1xf32>
    %c0_15 = arith.constant 0 : index
    %c0_16 = arith.constant 0 : index
    %20 = vector.load %arg7[%c0_15, %c0_16] : memref<24x128xf32, #tpu.memory_space<vmem>>, vector<24x128xf32>
    %cst_17 = arith.constant dense<0.000000e+00> : vector<8x128xf32>
    %21 = tpu.matmul %0, %20, %cst_17 {dimension_numbers = #tpu.dot_dimension_numbers<[1], [0], [0], [1], [0, 0, 1, 1], [], []>} : vector<8x24xf32>, vector<24x128xf32>, vector<8x128xf32> -> vector<8x128xf32>
    %c0_18 = arith.constant 0 : index
    %c0_19 = arith.constant 0 : index
    %22 = vector.load %arg8[%c0_18, %c0_19] : memref<1x128xf32, #tpu.memory_space<vmem>>, vector<1x128xf32>
    %23 = vector.broadcast %22 : vector<1x128xf32> to vector<8x128xf32>
    %24 = arith.addf %21, %23 : vector<8x128xf32>
    %cst_20 = arith.constant 0.000000e+00 : f32
    %25 = vector.broadcast %cst_20 : f32 to vector<8x128xf32>
    %26 = arith.maximumf %24, %25 : vector<8x128xf32>
    %c0_21 = arith.constant 0 : index
    %c0_22 = arith.constant 0 : index
    %27 = vector.load %arg9[%c0_21, %c0_22] : memref<128x128xf32, #tpu.memory_space<vmem>>, vector<128x128xf32>
    %cst_23 = arith.constant dense<0.000000e+00> : vector<8x128xf32>
    %28 = tpu.matmul %26, %27, %cst_23 {dimension_numbers = #tpu.dot_dimension_numbers<[1], [0], [0], [1], [0, 0, 1, 1], [], []>} : vector<8x128xf32>, vector<128x128xf32>, vector<8x128xf32> -> vector<8x128xf32>
    %c0_24 = arith.constant 0 : index
    %c0_25 = arith.constant 0 : index
    %29 = vector.load %arg10[%c0_24, %c0_25] : memref<1x128xf32, #tpu.memory_space<vmem>>, vector<1x128xf32>
    %30 = vector.broadcast %29 : vector<1x128xf32> to vector<8x128xf32>
    %31 = arith.addf %28, %30 : vector<8x128xf32>
    %cst_26 = arith.constant 0.000000e+00 : f32
    %32 = vector.broadcast %cst_26 : f32 to vector<8x128xf32>
    %33 = arith.maximumf %31, %32 : vector<8x128xf32>
    %c0_27 = arith.constant 0 : index
    %c0_28 = arith.constant 0 : index
    %34 = vector.load %arg11[%c0_27, %c0_28] : memref<1x128xf32, #tpu.memory_space<vmem>>, vector<1x128xf32>
    %35 = vector.broadcast %34 : vector<1x128xf32> to vector<8x128xf32>
    %36 = arith.mulf %33, %35 : vector<8x128xf32>
    %cst_29 = arith.constant dense<0.000000e+00> : vector<8xf32>
    %37 = vector.multi_reduction <add>, %36, %cst_29 [1] : vector<8x128xf32> to vector<8xf32>
    %38 = vector.shape_cast %37 : vector<8xf32> to vector<8x1xf32>
    %39 = tpu.iota {dimensions = array<i32: 1>} : vector<8x128xi32>
    %c0_i32 = arith.constant 0 : i32
    %40 = vector.broadcast %c0_i32 : i32 to vector<8x128xi32>
    %41 = arith.cmpi eq, %39, %40 : vector<8x128xi32>
    %c1_i32 = arith.constant 1 : i32
    %42 = vector.broadcast %c1_i32 : i32 to vector<8x128xi32>
    %43 = arith.cmpi eq, %39, %42 : vector<8x128xi32>
    %cst_30 = arith.constant 0.000000e+00 : f32
    %44 = vector.shape_cast %38 : vector<8x1xf32> to vector<8x1xf32>
    %45 = vector.broadcast %44 : vector<8x1xf32> to vector<8x128xf32>
    %46 = vector.broadcast %cst_30 : f32 to vector<8x128xf32>
    %47 = arith.select %43, %45, %46 : vector<8x128xi1>, vector<8x128xf32>
    %48 = vector.shape_cast %19 : vector<8x1xf32> to vector<8x1xf32>
    %49 = vector.broadcast %48 : vector<8x1xf32> to vector<8x128xf32>
    %50 = arith.select %41, %49, %47 : vector<8x128xi1>, vector<8x128xf32>
    %c0_31 = arith.constant 0 : index
    %c0_32 = arith.constant 0 : index
    %51 = vector.load %arg12[%c0_31, %c0_32] : memref<1x128xf32, #tpu.memory_space<vmem>>, vector<1x128xf32>
    %52 = vector.broadcast %51 : vector<1x128xf32> to vector<8x128xf32>
    %53 = arith.addf %50, %52 : vector<8x128xf32>
    %c0_33 = arith.constant 0 : index
    %c0_34 = arith.constant 0 : index
    %54 = vector.load %arg13[%c0_33, %c0_34] : memref<8x128xf32, #tpu.memory_space<vmem>>, vector<8x128xf32>
    tpu.vector_store %arg13[%c0_33, %c0_34], %53 {strides = array<i32>} : memref<8x128xf32, #tpu.memory_space<vmem>>, vector<8x128xf32>,
    return
  }
  func.func @transform_0(%arg0: i32) -> (i32, i32) {
    %c0_i32 = arith.constant 0 : i32
    %c0_i32_0 = arith.constant 0 : i32
    return %arg0, %c0_i32 : i32, i32
  }
  func.func @transform_1(%arg0: i32) -> (i32, i32) {
    %c0_i32 = arith.constant 0 : i32
    %c0_i32_0 = arith.constant 0 : i32
    %c0_i32_1 = arith.constant 0 : i32
    return %c0_i32, %c0_i32_0 : i32, i32
  }
  func.func @transform_2(%arg0: i32) -> (i32, i32) {
    %c0_i32 = arith.constant 0 : i32
    %c0_i32_0 = arith.constant 0 : i32
    %c0_i32_1 = arith.constant 0 : i32
    return %c0_i32, %c0_i32_0 : i32, i32
  }
  func.func @transform_3(%arg0: i32) -> (i32, i32) {
    %c0_i32 = arith.constant 0 : i32
    %c0_i32_0 = arith.constant 0 : i32
    %c0_i32_1 = arith.constant 0 : i32
    return %c0_i32, %c0_i32_0 : i32, i32
  }
  func.func @transform_4(%arg0: i32) -> (i32, i32) {
    %c0_i32 = arith.constant 0 : i32
    %c0_i32_0 = arith.constant 0 : i32
    %c0_i32_1 = arith.constant 0 : i32
    return %c0_i32, %c0_i32_0 : i32, i32
  }
  func.func @transform_5(%arg0: i32) -> (i32, i32) {
    %c0_i32 = arith.constant 0 : i32
    %c0_i32_0 = arith.constant 0 : i32
    %c0_i32_1 = arith.constant 0 : i32
    return %c0_i32, %c0_i32_0 : i32, i32
  }
  func.func @transform_6(%arg0: i32) -> (i32, i32) {
    %c0_i32 = arith.constant 0 : i32
    %c0_i32_0 = arith.constant 0 : i32
    %c0_i32_1 = arith.constant 0 : i32
    return %c0_i32, %c0_i32_0 : i32, i32
  }
  func.func @transform_7(%arg0: i32) -> (i32, i32) {
    %c0_i32 = arith.constant 0 : i32
    %c0_i32_0 = arith.constant 0 : i32
    %c0_i32_1 = arith.constant 0 : i32
    return %c0_i32, %c0_i32_0 : i32, i32
  }
  func.func @transform_8(%arg0: i32) -> (i32, i32) {
    %c0_i32 = arith.constant 0 : i32
    %c0_i32_0 = arith.constant 0 : i32
    %c0_i32_1 = arith.constant 0 : i32
    return %c0_i32, %c0_i32_0 : i32, i32
  }
  func.func @transform_9(%arg0: i32) -> (i32, i32) {
    %c0_i32 = arith.constant 0 : i32
    %c0_i32_0 = arith.constant 0 : i32
    %c0_i32_1 = arith.constant 0 : i32
    return %c0_i32, %c0_i32_0 : i32, i32
  }
  func.func @transform_10(%arg0: i32) -> (i32, i32) {
    %c0_i32 = arith.constant 0 : i32
    %c0_i32_0 = arith.constant 0 : i32
    %c0_i32_1 = arith.constant 0 : i32
    return %c0_i32, %c0_i32_0 : i32, i32
  }
  func.func @transform_11(%arg0: i32) -> (i32, i32) {
    %c0_i32 = arith.constant 0 : i32
    %c0_i32_0 = arith.constant 0 : i32
    %c0_i32_1 = arith.constant 0 : i32
    return %c0_i32, %c0_i32_0 : i32, i32
  }
  func.func @transform_12(%arg0: i32) -> (i32, i32) {
    %c0_i32 = arith.constant 0 : i32
    %c0_i32_0 = arith.constant 0 : i32
    return %arg0, %c0_i32 : i32, i32
  }
}

</mosaic_0001>

<llo_original>
// kernel: tpu_custom_call.1
$region0: #{tpu_custom_call.1}
  #allocation0 [shape = 'u32[]', space=smem, size = 0x4, offset = 0x4, fixed_abs, tag = 'smem constant byte address 0x4 - core index']
  #allocation1 [shape = 'u32[144,128]{1,0:T(1,128)}', space=vmem, size = 0x12000, scoped, tag = 'internal scratch']
  %s0 = inlined_call_operand.hbm [shape: f32[8,24], index: 0, kind: input, shape index: {}]
  %s1 = inlined_call_operand.hbm [shape: f32[24,128], index: 1, kind: input, shape index: {}]
  %s2 = inlined_call_operand.vmem [shape: f32[1,128], index: 2, kind: input, shape index: {}]
  %s3 = inlined_call_operand.hbm [shape: f32[128,128], index: 3, kind: input, shape index: {}]
  %s4 = inlined_call_operand.vmem [shape: f32[1,128], index: 4, kind: input, shape index: {}]
  %s5 = inlined_call_operand.vmem [shape: f32[1,128], index: 5, kind: input, shape index: {}]
  %s6 = inlined_call_operand.hbm [shape: f32[24,128], index: 6, kind: input, shape index: {}]
  %s7 = inlined_call_operand.vmem [shape: f32[1,128], index: 7, kind: input, shape index: {}]
  %s8 = inlined_call_operand.hbm [shape: f32[128,128], index: 8, kind: input, shape index: {}]
  %s9 = inlined_call_operand.vmem [shape: f32[1,128], index: 9, kind: input, shape index: {}]
  %s10 = inlined_call_operand.vmem [shape: f32[1,128], index: 10, kind: input, shape index: {}]
  %s11 = inlined_call_operand.vmem [shape: f32[1,128], index: 11, kind: input, shape index: {}]
  %s12 = inlined_call_operand.hbm [shape: f32[8,128], index: 12, kind: output, shape index: {}]
  %s13 = sld [smem:[#allocation0]]
  $region78: #{tpu_custom_call.1} parent=0
    _
  %s15 = ssub.s32 1, %s13
  %s16 = scalar_select 0, %s15, %s13
  $region1: #{tpu_custom_call.1} parent=0
    #allocation2 [shape = 'u8[4096]{0}', space=vmem, size = 0x1000, scoped, tag = 'input window, operand 0, single buffered']
    #allocation3 [shape = 's32[1]{0}', space=sflag, size = 0x4, scoped, tag = 'scoped memory for tpu_custom_call.1']
    #allocation4 [shape = 's32[1]{0}', space=sflag, size = 0x4, scoped, tag = 'scoped memory for tpu_custom_call.1']
    #allocation5 [shape = 'u8[12288]{0}', space=vmem, size = 0x3000, scoped, tag = 'input window, operand 1, single buffered']
    #allocation6 [shape = 's32[1]{0}', space=sflag, size = 0x4, scoped, tag = 'scoped memory for tpu_custom_call.1']
    #allocation7 [shape = 'u8[65536]{0}', space=vmem, size = 0x10000, scoped, tag = 'input window, operand 3, single buffered']
    #allocation8 [shape = 'u8[12288]{0}', space=vmem, size = 0x3000, scoped, tag = 'input window, operand 6, single buffered']
    #allocation9 [shape = 's32[1]{0}', space=sflag, size = 0x4, scoped, tag = 'scoped memory for tpu_custom_call.1']
    #allocation10 [shape = 'u8[65536]{0}', space=vmem, size = 0x10000, scoped, tag = 'input window, operand 8, single buffered']
    #allocation11 [shape = 'u8[4096]{0}', space=vmem, size = 0x1000, scoped, tag = 'output window, operand 0, single buffered']
    %17 = vsyncpa [#allocation3], 0
    %18 = vsyncpa [#allocation6], 0
    %19 = vsyncpa [#allocation9], 0
    %20 = vsyncpa [#allocation4], 0
    // Predicated region
    $region2: #{tpu_custom_call.1} parent=1 // pred_check
      _
    $region3: #{tpu_custom_call.1} parent=1 // pred_check_branch
      %22 = sbr.rel (0) target = $region5
    $region4: #{tpu_custom_call.1} parent=1 // pred_region
      %s24 = ssub.s32 128, 128
      %25 = vsyncadd [#allocation3], %s24
      %s27 = sshll.u32 [#allocation2], 4
      %s28 = int_to_ptr.vmem [resolvable:$true] %s27
      %30 = dma.hbm_to_vmem [thread:$0]  %s0, 128, %s28, [#allocation3]
    $region5: #{tpu_custom_call.1} parent=1 // pred_fallthru
      _
    // Predicated region
    $region6: #{tpu_custom_call.1} parent=1 // pred_check
      _
    $region7: #{tpu_custom_call.1} parent=1 // pred_check_branch
      %32 = sbr.rel (0) target = $region9
    $region8: #{tpu_custom_call.1} parent=1 // pred_region
      %s34 = ssub.s32 384, 384
      %35 = vsyncadd [#allocation6], %s34
      %s36 = sshll.u32 [#allocation5], 4
      %s37 = int_to_ptr.vmem [resolvable:$true] %s36
      %42 = dma.hbm_to_vmem [thread:$0]  %s1, 384, %s37, [#allocation6], 128, 128, 8
    $region9: #{tpu_custom_call.1} parent=1 // pred_fallthru
      _
    // Predicated region
    $region10: #{tpu_custom_call.1} parent=1 // pred_check
      _
    $region11: #{tpu_custom_call.1} parent=1 // pred_check_branch
      %44 = sbr.rel (0) target = $region13
    $region12: #{tpu_custom_call.1} parent=1 // pred_region
      _
    $region13: #{tpu_custom_call.1} parent=1 // pred_fallthru
      _
    // Predicated region
    $region14: #{tpu_custom_call.1} parent=1 // pred_check
      _
    $region15: #{tpu_custom_call.1} parent=1 // pred_check_branch
      %46 = sbr.rel (0) target = $region17
    $region16: #{tpu_custom_call.1} parent=1 // pred_region
      %s48 = ssub.s32 2048, 2048
      %49 = vsyncadd [#allocation6], %s48
      %s50 = sshll.u32 [#allocation7], 4
      %s51 = int_to_ptr.vmem [resolvable:$true] %s50
      %56 = dma.hbm_to_vmem [thread:$0]  %s3, 2048, %s51, [#allocation6], 128, 128, 8
    $region17: #{tpu_custom_call.1} parent=1 // pred_fallthru
      _
    // Predicated region
    $region18: #{tpu_custom_call.1} parent=1 // pred_check
      _
    $region19: #{tpu_custom_call.1} parent=1 // pred_check_branch
      %58 = sbr.rel (0) target = $region21
    $region20: #{tpu_custom_call.1} parent=1 // pred_region
      _
    $region21: #{tpu_custom_call.1} parent=1 // pred_fallthru
      _
    // Predicated region
    $region22: #{tpu_custom_call.1} parent=1 // pred_check
      _
    $region23: #{tpu_custom_call.1} parent=1 // pred_check_branch
      %60 = sbr.rel (0) target = $region25
    $region24: #{tpu_custom_call.1} parent=1 // pred_region
      _
    $region25: #{tpu_custom_call.1} parent=1 // pred_fallthru
      _
    // Predicated region
    $region26: #{tpu_custom_call.1} parent=1 // pred_check
      _
    $region27: #{tpu_custom_call.1} parent=1 // pred_check_branch
      %62 = sbr.rel (0) target = $region29
    $region28: #{tpu_custom_call.1} parent=1 // pred_region
      %s64 = ssub.s32 384, 384
      %65 = vsyncadd [#allocation9], %s64
      %s66 = sshll.u32 [#allocation8], 4
      %s67 = int_to_ptr.vmem [resolvable:$true] %s66
      %72 = dma.hbm_to_vmem [thread:$0]  %s6, 384, %s67, [#allocation9], 128, 128, 8
    $region29: #{tpu_custom_call.1} parent=1 // pred_fallthru
      _
    // Predicated region
    $region30: #{tpu_custom_call.1} parent=1 // pred_check
      _
    $region31: #{tpu_custom_call.1} parent=1 // pred_check_branch
      %74 = sbr.rel (0) target = $region33
    $region32: #{tpu_custom_call.1} parent=1 // pred_region
      _
    $region33: #{tpu_custom_call.1} parent=1 // pred_fallthru
      _
    // Predicated region
    $region34: #{tpu_custom_call.1} parent=1 // pred_check
      _
    $region35: #{tpu_custom_call.1} parent=1 // pred_check_branch
      %76 = sbr.rel (0) target = $region37
    $region36: #{tpu_custom_call.1} parent=1 // pred_region
      %s78 = ssub.s32 2048, 2048
      %79 = vsyncadd [#allocation9], %s78
      %s80 = sshll.u32 [#allocation10], 4
      %s81 = int_to_ptr.vmem [resolvable:$true] %s80
      %86 = dma.hbm_to_vmem [thread:$0]  %s8, 2048, %s81, [#allocation9], 128, 128, 8
    $region37: #{tpu_custom_call.1} parent=1 // pred_fallthru
      _
    // Predicated region
    $region38: #{tpu_custom_call.1} parent=1 // pred_check
      _
    $region39: #{tpu_custom_call.1} parent=1 // pred_check_branch
      %88 = sbr.rel (0) target = $region41
    $region40: #{tpu_custom_call.1} parent=1 // pred_region
      _
    $region41: #{tpu_custom_call.1} parent=1 // pred_fallthru
      _
    // Predicated region
    $region42: #{tpu_custom_call.1} parent=1 // pred_check
      _
    $region43: #{tpu_custom_call.1} parent=1 // pred_check_branch
      %90 = sbr.rel (0) target = $region45
    $region44: #{tpu_custom_call.1} parent=1 // pred_region
      _
    $region45: #{tpu_custom_call.1} parent=1 // pred_fallthru
      _
    // Predicated region
    $region46: #{tpu_custom_call.1} parent=1 // pred_check
      _
    $region47: #{tpu_custom_call.1} parent=1 // pred_check_branch
      %92 = sbr.rel (0) target = $region49
    $region48: #{tpu_custom_call.1} parent=1 // pred_region
      _
    $region49: #{tpu_custom_call.1} parent=1 // pred_fallthru
      _
    // Predicated region
    $region50: #{tpu_custom_call.1} parent=1 // pred_check
      _
    $region51: #{tpu_custom_call.1} parent=1 // pred_check_branch
      %94 = sbr.rel (0) target = $region53
    $region52: #{tpu_custom_call.1} parent=1 // pred_region
      %95 = dma.done [#allocation3], 128
    $region53: #{tpu_custom_call.1} parent=1 // pred_fallthru
      _
    // Predicated region
    $region54: #{tpu_custom_call.1} parent=1 // pred_check
      _
    $region55: #{tpu_custom_call.1} parent=1 // pred_check_branch
      %97 = sbr.rel (0) target = $region57
    $region56: #{tpu_custom_call.1} parent=1 // pred_region
      %98 = dma.done [#allocation6], 384
    $region57: #{tpu_custom_call.1} parent=1 // pred_fallthru
      _
    // Predicated region
    $region58: #{tpu_custom_call.1} parent=1 // pred_check
      _
    $region59: #{tpu_custom_call.1} parent=1 // pred_check_branch
      %100 = sbr.rel (0) target = $region61
    $region60: #{tpu_custom_call.1} parent=1 // pred_region
      %101 = dma.done [#allocation6], 2048
    $region61: #{tpu_custom_call.1} parent=1 // pred_fallthru
      _
    // Predicated region
    $region62: #{tpu_custom_call.1} parent=1 // pred_check
      _
    $region63: #{tpu_custom_call.1} parent=1 // pred_check_branch
      %103 = sbr.rel (0) target = $region65
    $region64: #{tpu_custom_call.1} parent=1 // pred_region
      %104 = dma.done [#allocation9], 384
    $region65: #{tpu_custom_call.1} parent=1 // pred_fallthru
      _
    // Predicated region
    $region66: #{tpu_custom_call.1} parent=1 // pred_check
      _
    $region67: #{tpu_custom_call.1} parent=1 // pred_check_branch
      %106 = sbr.rel (0) target = $region69
    $region68: #{tpu_custom_call.1} parent=1 // pred_region
      %107 = dma.done [#allocation9], 2048
    $region69: #{tpu_custom_call.1} parent=1 // pred_fallthru
      _
    %v108 = vld [vmem:[#allocation2] sm:$0xff]
    %v109 = vld [vmem:[#allocation5] sm:$0xff]
    %v110 = vld [vmem:[#allocation5 + $0x8] sm:$0xff]
    %v111 = vld [vmem:[#allocation5 + $0x10] sm:$0xff]
    %v112 = vld [vmem:[%s2] sm:$0x1]
    %v114 = vlaneseq
    %v115 = vshrl.u32 %v114, 7
    %v116 = vsub.s32 0, %v115
    %v117 = vrot.slane %v112, %v116
    %vm119 = vcmask 195584
    %v121 = vsel %vm119, %v108, 0
    %123 = vmatprep.subr.mxu0 0.0
    %124 = vmatpush1.msra.mxu0 %v109
    %125 = vmatprep.subr.mxu0 0.0
    %126 = vmatpush1.msra.mxu0 %v110
    %127 = vmatprep.subr.mxu0 0.0
    %128 = vmatpush1.msra.mxu0 %v111
    %129 = vmatprep.subr.mxu0 0.0
    %130 = vmatpush1.msra.mxu0 0.0
    %131 = vmatprep.subr.mxu0 0.0
    %132 = vmatpush1.msra.mxu0 0.0
    %133 = vmatprep.subr.mxu0 0.0
    %134 = vmatpush1.msra.mxu0 0.0
    %135 = vmatprep.subr.mxu0 0.0
    %136 = vmatpush1.msra.mxu0 0.0
    %137 = vmatprep.subr.mxu0 0.0
    %138 = vmatpush1.msra.mxu0 0.0
    %139 = vmatprep.subr.mxu0 0.0
    %140 = vmatpush1.msra.mxu0 0.0
    %141 = vmatprep.subr.mxu0 0.0
    %142 = vmatpush1.msra.mxu0 0.0
    %143 = vmatprep.subr.mxu0 0.0
    %144 = vmatpush1.msra.mxu0 0.0
    %145 = vmatprep.subr.mxu0 0.0
    %146 = vmatpush1.msra.mxu0 0.0
    %147 = vmatprep.subr.mxu0 0.0
    %148 = vmatpush1.msra.mxu0 0.0
    %149 = vmatprep.subr.mxu0 0.0
    %150 = vmatpush1.msra.mxu0 0.0
    %151 = vmatprep.subr.mxu0 0.0
    %152 = vmatpush1.msra.mxu0 0.0
    %153 = vmatprep.subr.mxu0 0.0
    %154 = vmatpush1.msra.mxu0 0.0
    %155 = vmatprep.subr.mxu0 0.0
    %156 = vmatpush1.msra.mxu0 0.0
    %157 = vmatprep.subr.mxu0 0.0
    %158 = vmatpush1.msra.mxu0 0.0
    %159 = vmatprep.subr.mxu0 0.0
    %160 = vmatpush1.msra.mxu0 0.0
    %161 = vmatprep.subr.mxu0 0.0
    %162 = vmatpush1.msra.mxu0 0.0
    %163 = vmatprep.subr.mxu0 0.0
    %164 = vmatpush1.msra.mxu0 0.0
    %165 = vmatprep.subr.mxu0 0.0
    %166 = vmatpush1.msra.mxu0 0.0
    %167 = vmatprep.subr.mxu0 0.0
    %168 = vmatpush1.msra.mxu0 0.0
    %169 = vmatprep.subr.mxu0 0.0
    %170 = vmatpush1.msra.mxu0 0.0
    %171 = vmatprep.subr.mxu0 0.0
    %172 = vmatpush1.msra.mxu0 0.0
    %173 = vmatprep.subr.mxu0 0.0
    %174 = vmatpush1.msra.mxu0 0.0
    %175 = vmatprep.subr.mxu0 0.0
    %176 = vmatpush1.msra.mxu0 0.0
    %177 = vmatprep.subr.mxu0 0.0
    %178 = vmatpush1.msra.mxu0 0.0
    %179 = vmatprep.subr.mxu0 0.0
    %180 = vmatpush1.msra.mxu0 0.0
    %181 = vmatprep.subr.mxu0 0.0
    %182 = vmatpush1.msra.mxu0 0.0
    %183 = vmatprep.subr.mxu0 0.0
    %184 = vmatpush1.msra.mxu0 0.0
    %185 = vmatprep.subr.mxu0 0.0
    %186 = vmatpush1.msra.mxu0 0.0
    %187 = vmatprep.mubr.f32.mxu0 0.0
    %188 = vmatmul.mubr.f32.gmra.mrb[0].mxu0 %v121
    %v189 = vpop.f32.mrb[0].mxu0
    %v190 = vadd.f32 %v117, %v189
    %v191 = vpop.f32.mrb[0].mxu0
    %192 = vdwg.mxu0
    %v193 = vmax.f32 %v190, 0.0
    %v194 = vld [vmem:[#allocation7] sm:$0xff]
    %v195 = vld [vmem:[#allocation7 + $0x8] sm:$0xff]
    %v196 = vld [vmem:[#allocation7 + $0x10] sm:$0xff]
    %v197 = vld [vmem:[#allocation7 + $0x18] sm:$0xff]
    %v198 = vld [vmem:[#allocation7 + $0x20] sm:$0xff]
    %v199 = vld [vmem:[#allocation7 + $0x28] sm:$0xff]
    %v200 = vld [vmem:[#allocation7 + $0x30] sm:$0xff]
    %v201 = vld [vmem:[#allocation7 + $0x38] sm:$0xff]
    %v202 = vld [vmem:[#allocation7 + $0x40] sm:$0xff]
    %v203 = vld [vmem:[#allocation7 + $0x48] sm:$0xff]
    %v204 = vld [vmem:[#allocation7 + $0x50] sm:$0xff]
    %v205 = vld [vmem:[#allocation7 + $0x58] sm:$0xff]
    %v206 = vld [vmem:[#allocation7 + $0x60] sm:$0xff]
    %v207 = vld [vmem:[#allocation7 + $0x68] sm:$0xff]
    %v208 = vld [vmem:[#allocation7 + $0x70] sm:$0xff]
    %v209 = vld [vmem:[#allocation7 + $0x78] sm:$0xff]
    %v210 = vld [vmem:[%s4] sm:$0x1]
    %v212 = vlaneseq
    %v213 = vshrl.u32 %v212, 7
    %v214 = vsub.s32 0, %v213
    %v215 = vrot.slane %v210, %v214
    %217 = vmatprep.subr.mxu0 0.0
    %218 = vmatpush1.msra.mxu0 %v194
    %219 = vmatprep.subr.mxu0 0.0
    %220 = vmatpush1.msra.mxu0 %v195
    %221 = vmatprep.subr.mxu0 0.0
    %222 = vmatpush1.msra.mxu0 %v196
    %223 = vmatprep.subr.mxu0 0.0
    %224 = vmatpush1.msra.mxu0 %v197
    %225 = vmatprep.subr.mxu0 0.0
    %226 = vmatpush1.msra.mxu0 %v198
    %227 = vmatprep.subr.mxu0 0.0
    %228 = vmatpush1.msra.mxu0 %v199
    %229 = vmatprep.subr.mxu0 0.0
    %230 = vmatpush1.msra.mxu0 %v200
    %231 = vmatprep.subr.mxu0 0.0
    %232 = vmatpush1.msra.mxu0 %v201
    %233 = vmatprep.subr.mxu0 0.0
    %234 = vmatpush1.msra.mxu0 %v202
    %235 = vmatprep.subr.mxu0 0.0
    %236 = vmatpush1.msra.mxu0 %v203
    %237 = vmatprep.subr.mxu0 0.0
    %238 = vmatpush1.msra.mxu0 %v204
    %239 = vmatprep.subr.mxu0 0.0
    %240 = vmatpush1.msra.mxu0 %v205
    %241 = vmatprep.subr.mxu0 0.0
    %242 = vmatpush1.msra.mxu0 %v206
    %243 = vmatprep.subr.mxu0 0.0
    %244 = vmatpush1.msra.mxu0 %v207
    %245 = vmatprep.subr.mxu0 0.0
    %246 = vmatpush1.msra.mxu0 %v208
    %247 = vmatprep.subr.mxu0 0.0
    %248 = vmatpush1.msra.mxu0 %v209
    %249 = vmatprep.subr.mxu0 0.0
    %250 = vmatpush1.msra.mxu0 0.0
    %251 = vmatprep.subr.mxu0 0.0
    %252 = vmatpush1.msra.mxu0 0.0
    %253 = vmatprep.subr.mxu0 0.0
    %254 = vmatpush1.msra.mxu0 0.0
    %255 = vmatprep.subr.mxu0 0.0
    %256 = vmatpush1.msra.mxu0 0.0
    %257 = vmatprep.subr.mxu0 0.0
    %258 = vmatpush1.msra.mxu0 0.0
    %259 = vmatprep.subr.mxu0 0.0
    %260 = vmatpush1.msra.mxu0 0.0
    %261 = vmatprep.subr.mxu0 0.0
    %262 = vmatpush1.msra.mxu0 0.0
    %263 = vmatprep.subr.mxu0 0.0
    %264 = vmatpush1.msra.mxu0 0.0
    %265 = vmatprep.subr.mxu0 0.0
    %266 = vmatpush1.msra.mxu0 0.0
    %267 = vmatprep.subr.mxu0 0.0
    %268 = vmatpush1.msra.mxu0 0.0
    %269 = vmatprep.subr.mxu0 0.0
    %270 = vmatpush1.msra.mxu0 0.0
    %271 = vmatprep.subr.mxu0 0.0
    %272 = vmatpush1.msra.mxu0 0.0
    %273 = vmatprep.subr.mxu0 0.0
    %274 = vmatpush1.msra.mxu0 0.0
    %275 = vmatprep.subr.mxu0 0.0
    %276 = vmatpush1.msra.mxu0 0.0
    %277 = vmatprep.subr.mxu0 0.0
    %278 = vmatpush1.msra.mxu0 0.0
    %279 = vmatprep.subr.mxu0 0.0
    %280 = vmatpush1.msra.mxu0 0.0
    %281 = vmatprep.mubr.f32.mxu0 0.0
    %282 = vmatmul.mubr.f32.gmra.mrb[0].mxu0 %v193
    %v283 = vpop.f32.mrb[0].mxu0
    %v284 = vadd.f32 %v215, %v283
    %v285 = vpop.f32.mrb[0].mxu0
    %286 = vdwg.mxu0
    %v287 = vmax.f32 %v284, 0.0
    %v288 = vld [vmem:[%s5] sm:$0x1]
    %v290 = vlaneseq
    %v291 = vshrl.u32 %v290, 7
    %v292 = vsub.s32 0, %v291
    %v293 = vrot.slane %v288, %v292
    %v295 = vmul.f32 %v287, %v293
    %296 = vadd.xlane.f32.xlu0 %v295
    %v297 = vpop.xlane.xlu0 %296
    %v298 = vld [vmem:[#allocation8] sm:$0xff]
    %v299 = vld [vmem:[#allocation8 + $0x8] sm:$0xff]
    %v300 = vld [vmem:[#allocation8 + $0x10] sm:$0xff]
    %v301 = vld [vmem:[%s7] sm:$0x1]
    %v303 = vlaneseq
    %v304 = vshrl.u32 %v303, 7
    %v305 = vsub.s32 0, %v304
    %v306 = vrot.slane %v301, %v305
    %308 = vmatprep.subr.mxu0 0.0
    %309 = vmatpush1.msra.mxu0 %v298
    %310 = vmatprep.subr.mxu0 0.0
    %311 = vmatpush1.msra.mxu0 %v299
    %312 = vmatprep.subr.mxu0 0.0
    %313 = vmatpush1.msra.mxu0 %v300
    %314 = vmatprep.subr.mxu0 0.0
    %315 = vmatpush1.msra.mxu0 0.0
    %316 = vmatprep.subr.mxu0 0.0
    %317 = vmatpush1.msra.mxu0 0.0
    %318 = vmatprep.subr.mxu0 0.0
    %319 = vmatpush1.msra.mxu0 0.0
    %320 = vmatprep.subr.mxu0 0.0
    %321 = vmatpush1.msra.mxu0 0.0
    %322 = vmatprep.subr.mxu0 0.0
    %323 = vmatpush1.msra.mxu0 0.0
    %324 = vmatprep.subr.mxu0 0.0
    %325 = vmatpush1.msra.mxu0 0.0
    %326 = vmatprep.subr.mxu0 0.0
    %327 = vmatpush1.msra.mxu0 0.0
    %328 = vmatprep.subr.mxu0 0.0
    %329 = vmatpush1.msra.mxu0 0.0
    %330 = vmatprep.subr.mxu0 0.0
    %331 = vmatpush1.msra.mxu0 0.0
    %332 = vmatprep.subr.mxu0 0.0
    %333 = vmatpush1.msra.mxu0 0.0
    %334 = vmatprep.subr.mxu0 0.0
    %335 = vmatpush1.msra.mxu0 0.0
    %336 = vmatprep.subr.mxu0 0.0
    %337 = vmatpush1.msra.mxu0 0.0
    %338 = vmatprep.subr.mxu0 0.0
    %339 = vmatpush1.msra.mxu0 0.0
    %340 = vmatprep.subr.mxu0 0.0
    %341 = vmatpush1.msra.mxu0 0.0
    %342 = vmatprep.subr.mxu0 0.0
    %343 = vmatpush1.msra.mxu0 0.0
    %344 = vmatprep.subr.mxu0 0.0
    %345 = vmatpush1.msra.mxu0 0.0
    %346 = vmatprep.subr.mxu0 0.0
    %347 = vmatpush1.msra.mxu0 0.0
    %348 = vmatprep.subr.mxu0 0.0
    %349 = vmatpush1.msra.mxu0 0.0
    %350 = vmatprep.subr.mxu0 0.0
    %351 = vmatpush1.msra.mxu0 0.0
    %352 = vmatprep.subr.mxu0 0.0
    %353 = vmatpush1.msra.mxu0 0.0
    %354 = vmatprep.subr.mxu0 0.0
    %355 = vmatpush1.msra.mxu0 0.0
    %356 = vmatprep.subr.mxu0 0.0
    %357 = vmatpush1.msra.mxu0 0.0
    %358 = vmatprep.subr.mxu0 0.0
    %359 = vmatpush1.msra.mxu0 0.0
    %360 = vmatprep.subr.mxu0 0.0
    %361 = vmatpush1.msra.mxu0 0.0
    %362 = vmatprep.subr.mxu0 0.0
    %363 = vmatpush1.msra.mxu0 0.0
    %364 = vmatprep.subr.mxu0 0.0
    %365 = vmatpush1.msra.mxu0 0.0
    %366 = vmatprep.subr.mxu0 0.0
    %367 = vmatpush1.msra.mxu0 0.0
    %368 = vmatprep.subr.mxu0 0.0
    %369 = vmatpush1.msra.mxu0 0.0
    %370 = vmatprep.subr.mxu0 0.0
    %371 = vmatpush1.msra.mxu0 0.0
    %372 = vmatprep.mubr.f32.mxu0 0.0
    %373 = vmatmul.mubr.f32.gmra.mrb[0].mxu0 %v121
    %v374 = vpop.f32.mrb[0].mxu0
    %v375 = vadd.f32 %v306, %v374
    %v376 = vpop.f32.mrb[0].mxu0
    %377 = vdwg.mxu0
    %v378 = vmax.f32 %v375, 0.0
    %v379 = vld [vmem:[#allocation10] sm:$0xff]
    %v380 = vld [vmem:[#allocation10 + $0x8] sm:$0xff]
    %v381 = vld [vmem:[#allocation10 + $0x10] sm:$0xff]
    %v382 = vld [vmem:[#allocation10 + $0x18] sm:$0xff]
    %v383 = vld [vmem:[#allocation10 + $0x20] sm:$0xff]
    %v384 = vld [vmem:[#allocation10 + $0x28] sm:$0xff]
    %v385 = vld [vmem:[#allocation10 + $0x30] sm:$0xff]
    %v386 = vld [vmem:[#allocation10 + $0x38] sm:$0xff]
    %v387 = vld [vmem:[#allocation10 + $0x40] sm:$0xff]
    %v388 = vld [vmem:[#allocation10 + $0x48] sm:$0xff]
    %v389 = vld [vmem:[#allocation10 + $0x50] sm:$0xff]
    %v390 = vld [vmem:[#allocation10 + $0x58] sm:$0xff]
    %v391 = vld [vmem:[#allocation10 + $0x60] sm:$0xff]
    %v392 = vld [vmem:[#allocation10 + $0x68] sm:$0xff]
    %v393 = vld [vmem:[#allocation10 + $0x70] sm:$0xff]
    %v394 = vld [vmem:[#allocation10 + $0x78] sm:$0xff]
    %v395 = vld [vmem:[%s9] sm:$0x1]
    %v397 = vlaneseq
    %v398 = vshrl.u32 %v397, 7
    %v399 = vsub.s32 0, %v398
    %v400 = vrot.slane %v395, %v399
    %402 = vmatprep.subr.mxu0 0.0
    %403 = vmatpush1.msra.mxu0 %v379
    %404 = vmatprep.subr.mxu0 0.0
    %405 = vmatpush1.msra.mxu0 %v380
    %406 = vmatprep.subr.mxu0 0.0
    %407 = vmatpush1.msra.mxu0 %v381
    %408 = vmatprep.subr.mxu0 0.0
    %409 = vmatpush1.msra.mxu0 %v382
    %410 = vmatprep.subr.mxu0 0.0
    %411 = vmatpush1.msra.mxu0 %v383
    %412 = vmatprep.subr.mxu0 0.0
    %413 = vmatpush1.msra.mxu0 %v384
    %414 = vmatprep.subr.mxu0 0.0
    %415 = vmatpush1.msra.mxu0 %v385
    %416 = vmatprep.subr.mxu0 0.0
    %417 = vmatpush1.msra.mxu0 %v386
    %418 = vmatprep.subr.mxu0 0.0
    %419 = vmatpush1.msra.mxu0 %v387
    %420 = vmatprep.subr.mxu0 0.0
    %421 = vmatpush1.msra.mxu0 %v388
    %422 = vmatprep.subr.mxu0 0.0
    %423 = vmatpush1.msra.mxu0 %v389
    %424 = vmatprep.subr.mxu0 0.0
    %425 = vmatpush1.msra.mxu0 %v390
    %426 = vmatprep.subr.mxu0 0.0
    %427 = vmatpush1.msra.mxu0 %v391
    %428 = vmatprep.subr.mxu0 0.0
    %429 = vmatpush1.msra.mxu0 %v392
    %430 = vmatprep.subr.mxu0 0.0
    %431 = vmatpush1.msra.mxu0 %v393
    %432 = vmatprep.subr.mxu0 0.0
    %433 = vmatpush1.msra.mxu0 %v394
    %434 = vmatprep.subr.mxu0 0.0
    %435 = vmatpush1.msra.mxu0 0.0
    %436 = vmatprep.subr.mxu0 0.0
    %437 = vmatpush1.msra.mxu0 0.0
    %438 = vmatprep.subr.mxu0 0.0
    %439 = vmatpush1.msra.mxu0 0.0
    %440 = vmatprep.subr.mxu0 0.0
    %441 = vmatpush1.msra.mxu0 0.0
    %442 = vmatprep.subr.mxu0 0.0
    %443 = vmatpush1.msra.mxu0 0.0
    %444 = vmatprep.subr.mxu0 0.0
    %445 = vmatpush1.msra.mxu0 0.0
    %446 = vmatprep.subr.mxu0 0.0
    %447 = vmatpush1.msra.mxu0 0.0
    %448 = vmatprep.subr.mxu0 0.0
    %449 = vmatpush1.msra.mxu0 0.0
    %450 = vmatprep.subr.mxu0 0.0
    %451 = vmatpush1.msra.mxu0 0.0
    %452 = vmatprep.subr.mxu0 0.0
    %453 = vmatpush1.msra.mxu0 0.0
    %454 = vmatprep.subr.mxu0 0.0
    %455 = vmatpush1.msra.mxu0 0.0
    %456 = vmatprep.subr.mxu0 0.0
    %457 = vmatpush1.msra.mxu0 0.0
    %458 = vmatprep.subr.mxu0 0.0
    %459 = vmatpush1.msra.mxu0 0.0
    %460 = vmatprep.subr.mxu0 0.0
    %461 = vmatpush1.msra.mxu0 0.0
    %462 = vmatprep.subr.mxu0 0.0
    %463 = vmatpush1.msra.mxu0 0.0
    %464 = vmatprep.subr.mxu0 0.0
    %465 = vmatpush1.msra.mxu0 0.0
    %466 = vmatprep.mubr.f32.mxu0 0.0
    %467 = vmatmul.mubr.f32.gmra.mrb[0].mxu0 %v378
    %v468 = vpop.f32.mrb[0].mxu0
    %v469 = vadd.f32 %v400, %v468
    %v470 = vpop.f32.mrb[0].mxu0
    %471 = vdwg.mxu0
    %v472 = vmax.f32 %v469, 0.0
    %v473 = vld [vmem:[%s10] sm:$0x1]
    %v475 = vlaneseq
    %v476 = vshrl.u32 %v475, 7
    %v477 = vsub.s32 0, %v476
    %v478 = vrot.slane %v473, %v477
    %v480 = vmul.f32 %v472, %v478
    %481 = vadd.xlane.f32.xlu0 %v480
    %v482 = vpop.xlane.xlu0 %481
    %v483 = vlaneseq
    %v484 = vand.u32 %v483, 127
    %vm485 = vcmp.eq.s32.totalorder %v484, 0
    %vm486 = vcmp.eq.s32.totalorder %v484, 1
    %v487 = vsel %vm486, %v482, 0.0
    %v488 = vsel %vm485, %v297, %v487
    %v489 = vld [vmem:[%s11] sm:$0x1]
    %v491 = vlaneseq
    %v492 = vshrl.u32 %v491, 7
    %v493 = vsub.s32 0, %v492
    %v494 = vrot.slane %v489, %v493
    %v496 = vadd.f32 %v488, %v494
    %497 = vst [vmem:[#allocation11] sm:$0xff] %v496
    // Predicated region
    $region70: #{tpu_custom_call.1} parent=1 // pred_check
      _
    $region71: #{tpu_custom_call.1} parent=1 // pred_check_branch
      %499 = sbr.rel (0) target = $region73
    $region72: #{tpu_custom_call.1} parent=1 // pred_region
      %s501 = ssub.s32 128, 128
      %502 = vsyncadd [#allocation4], %s501
      %s504 = sshll.u32 [#allocation11], 4
      %s505 = int_to_ptr.vmem [resolvable:$true] %s504
      %507 = dma.vmem_to_hbm [thread:$0]  %s505, 128, %s12, [#allocation4]
    $region73: #{tpu_custom_call.1} parent=1 // pred_fallthru
      _
    // Predicated region
    $region74: #{tpu_custom_call.1} parent=1 // pred_check
      _
    $region75: #{tpu_custom_call.1} parent=1 // pred_check_branch
      %509 = sbr.rel (0) target = $region77
    $region76: #{tpu_custom_call.1} parent=1 // pred_region
      %510 = dma.done [#allocation4], 128
    $region77: #{tpu_custom_call.1} parent=1 // pred_fallthru
      _
    %511 = vsyncpa [#allocation3], 1
    %512 = vsyncpa [#allocation6], 1
    %513 = vsyncpa [#allocation9], 1
    %514 = vsyncpa [#allocation4], 1

</llo_original>
